<compile_context>
chip_gen: v7x
topology: tpu7x:2x2x1
jax: 0.10.0
libtpu: 0.0.40
codegen_flags: <defaults>
</compile_context>

<pallas_src>
import functools

import jax
import jax.numpy as jnp
from jax import lax
from jax.experimental import pallas as pl
from jax.experimental.pallas import tpu as pltpu

KH = KW = 5
PAD = 2
BN_EPS = 1e-5
NEG_SLOPE = 0.2


# --------------------------------------------------------------------------
# Fused kernel: conv (one wide MXU matmul) + exact batch stats
#               + BatchNorm + LeakyReLU, all VMEM-resident.
# --------------------------------------------------------------------------
def conv_bn_lrelu_kernel(patch_ref, w_ref, gamma_ref, beta_ref, out_ref,
                         *, n, hw, inv_count):
    # One wide MXU matmul: (Cout, K) @ (K, N*HW) -> (Cout, N*HW).
    # bf16 operands, f32 accumulation; N*HW sits in the lane dim (lane-dense).
    y = jnp.dot(w_ref[...], patch_ref[...],
                preferred_element_type=jnp.float32)            # (Cout, N*HW)

    # Exact two-pass per-channel batch statistics (whole batch is resident):
    # lane-axis reduces go to the XLU slot, rsqrt to the EUP slot.
    mean = y.sum(axis=1, keepdims=True) * inv_count            # (Cout, 1)
    centered = y - mean
    var = (centered * centered).sum(axis=1, keepdims=True) * inv_count
    scale = gamma_ref[...] * lax.rsqrt(var + BN_EPS)           # (Cout, 1)

    z = centered * scale + beta_ref[...]                       # BatchNorm
    z = jnp.where(z >= 0.0, z, NEG_SLOPE * z)                  # LeakyReLU(0.2)

    # Static, lane-aligned splits (hw is a multiple of 128) back to
    # (N, Cout, HW): full-lane unmasked stores, NCHW reshape is free outside.
    for i in range(n):
        out_ref[i] = z[:, i * hw:(i + 1) * hw]


# --------------------------------------------------------------------------
# Wrapper: PyTorch-like Upsample.forward (NCHW in, NCHW out)
# --------------------------------------------------------------------------
def upsample_forward(x_nchw, weight_oihw, gamma, beta, *, use_bf16=True):
    N, Cin, H, W = x_nchw.shape
    Cout = weight_oihw.shape[0]
    HW = H * W
    K = KH * KW * Cin

    # bf16 MXU operands by default on ALL generations (f32 accumulation in the
    # kernel protects accuracy); also halves the staged-patch HBM bytes.
    op_dtype = jnp.bfloat16 if use_bf16 else jnp.float32
    x = x_nchw.astype(op_dtype)

    # im2col staged in the wrapper (layout plumbing only; see TODO above for
    # the in-kernel version needed at production shapes):
    #   patch[(kh*KW+kw)*Cin + c, n*HW + h*W + w] == xpad[n, c, h+kh, w+kw]
    xpad = jnp.pad(x, ((0, 0), (0, 0), (PAD, PAD), (PAD, PAD)))
    xpad_t = jnp.transpose(xpad, (1, 0, 2, 3))                 # (Cin, N, Hp, Wp)
    slabs = [xpad_t[:, :, kh:kh + H, kw:kw + W]
             for kh in range(KH) for kw in range(KW)]          # (Cin,N,H,W) each
    patch = jnp.stack(slabs, axis=0).reshape(K, N * HW)        # (K, N*HW)

    # (Cout, Cin, KH, KW) -> (Cout, KH, KW, Cin) -> (Cout, K): column order
    # matches the patch row order above.
    w_flat = jnp.transpose(weight_oihw.astype(op_dtype),
                           (0, 2, 3, 1)).reshape(Cout, K)

    gamma_c = gamma.astype(jnp.float32).reshape(Cout, 1)
    beta_c = beta.astype(jnp.float32).reshape(Cout, 1)

    kernel = functools.partial(conv_bn_lrelu_kernel,
                               n=N, hw=HW,
                               inv_count=1.0 / float(N * HW))

    # Scoped-VMEM budget: double-buffered inputs + output + headroom
    # (v5e default scoped limit is only 16 MiB -> size it explicitly).
    itemsize = 2 if use_bf16 else 4
    vmem_bytes = (2 * (K * N * HW + Cout * K) * itemsize
                  + 2 * N * Cout * HW * 4
                  + (1 << 20))
    vmem_bytes = int(min(max(vmem_bytes, 4 << 20), 100 << 20))

    out_flat = pl.pallas_call(
        kernel,
        # Output kept f32 for strict parity with the PyTorch module.
        out_shape=jax.ShapeDtypeStruct((N, Cout, HW), jnp.float32),
        grid_spec=pltpu.PrefetchScalarGridSpec(
            num_scalar_prefetch=0,
            grid=(1,),
            in_specs=[
                pl.BlockSpec((K, N * HW), lambda i: (0, 0)),   # im2col patch
                pl.BlockSpec((Cout, K), lambda i: (0, 0)),     # flat weights
                pl.BlockSpec((Cout, 1), lambda i: (0, 0)),     # gamma
                pl.BlockSpec((Cout, 1), lambda i: (0, 0)),     # beta
            ],
            out_specs=pl.BlockSpec((N, Cout, HW), lambda i: (0, 0, 0)),
        ),
        compiler_params=pltpu.CompilerParams(
            dimension_semantics=("arbitrary",),
            vmem_limit_bytes=vmem_bytes),
    )(patch, w_flat, gamma_c, beta_c)

    # (N, Cout, H*W) is already channel-major: reshape (no transpose) to NCHW.
    return out_flat.reshape(N, Cout, H, W)


# --------------------------------------------------------------------------
# Pure-JAX reference for a sanity check
# --------------------------------------------------------------------------
def upsample_reference(x_nchw, weight_oihw, gamma, beta):
    y = lax.conv_general_dilated(
        x_nchw.astype(jnp.float32), weight_oihw.astype(jnp.float32),
        window_strides=(1, 1), padding=((PAD, PAD), (PAD, PAD)),
        dimension_numbers=("NCHW", "OIHW", "NCHW"),
        preferred_element_type=jnp.float32)
    mean = jnp.mean(y, axis=(0, 2, 3), keepdims=True)
    var = jnp.mean((y - mean) ** 2, axis=(0, 2, 3), keepdims=True)
    yh = (y - mean) * lax.rsqrt(var + BN_EPS)
    yh = yh * gamma.reshape(1, -1, 1, 1) + beta.reshape(1, -1, 1, 1)
    return jnp.where(yh >= 0, yh, NEG_SLOPE * yh)


if __name__ == "__main__":
    # Small shapes consistent with the module: N=2, in_dims=4, out_dims=8, 16x16.
    N, Cin, Cout, H, W = 2, 4, 8, 16, 16

    key = jax.random.PRNGKey(0)
    kx, kw = jax.random.split(key)
    x = jax.random.normal(kx, (N, Cin, H, W), dtype=jnp.float32)
    fan_in = Cin * KH * KW
    weight = jax.random.normal(kw, (Cout, Cin, KH, KW), dtype=jnp.float32) * (
        2.0 / fan_in) ** 0.5
    gamma = jnp.ones((Cout,), jnp.float32)   # BatchNorm affine at PyTorch init
    beta = jnp.zeros((Cout,), jnp.float32)

    out = jax.block_until_ready(upsample_forward(x, weight, gamma, beta))
    ref = jax.block_until_ready(upsample_reference(x, weight, gamma, beta))

    assert out.shape == (N, Cout, H, W)
    # Tolerance covers bf16 MXU operands (f32 accumulation); reference is f32.
    assert jnp.allclose(out, ref, rtol=2e-2, atol=2e-2)
    print("KERNEL_OK")
</pallas_src>

<mosaic_0001>
module attributes {stable_mosaic.version = 11 : i64} {
  func.func @conv_bn_lrelu_kernel(%arg0: i32, %arg1: memref<100x512xbf16, #tpu.memory_space<vmem>>, %arg2: memref<8x100xbf16, #tpu.memory_space<vmem>>, %arg3: memref<8x1xf32, #tpu.memory_space<vmem>>, %arg4: memref<8x1xf32, #tpu.memory_space<vmem>>, %arg5: memref<2x8x256xf32, #tpu.memory_space<vmem>>) attributes {dimension_semantics = [#tpu.dimension_semantics<arbitrary>], iteration_bounds = array<i64: 1>, scalar_prefetch = 0 : i64, scratch_operands = 0 : i64, tpu.core_type = #tpu.core_type<tc>, window_params = [{pipeline_mode = #tpu.pipeline_mode<synchronous>, transform_indices = @transform_0, window_bounds = array<i64: 100, 512>}, {pipeline_mode = #tpu.pipeline_mode<synchronous>, transform_indices = @transform_1, window_bounds = array<i64: 8, 100>}, {pipeline_mode = #tpu.pipeline_mode<synchronous>, transform_indices = @transform_2, window_bounds = array<i64: 8, 1>}, {pipeline_mode = #tpu.pipeline_mode<synchronous>, transform_indices = @transform_3, window_bounds = array<i64: 8, 1>}, {pipeline_mode = #tpu.pipeline_mode<synchronous>, transform_indices = @transform_4, window_bounds = array<i64: 2, 8, 256>}]} {
    %c0 = arith.constant 0 : index
    %c0_0 = arith.constant 0 : index
    %0 = vector.load %arg2[%c0, %c0_0] : memref<8x100xbf16, #tpu.memory_space<vmem>>, vector<8x100xbf16>
    %c0_1 = arith.constant 0 : index
    %c0_2 = arith.constant 0 : index
    %1 = vector.load %arg1[%c0_1, %c0_2] : memref<100x512xbf16, #tpu.memory_space<vmem>>, vector<100x512xbf16>
    %cst = arith.constant dense<0.000000e+00> : vector<8x512xf32>
    %2 = tpu.matmul %0, %1, %cst {dimension_numbers = #tpu.dot_dimension_numbers<[1], [0], [0], [1], [0, 0, 1, 1], [], []>} : vector<8x100xbf16>, vector<100x512xbf16>, vector<8x512xf32> -> vector<8x512xf32>
    %cst_3 = arith.constant dense<0.000000e+00> : vector<8xf32>
    %3 = vector.multi_reduction <add>, %2, %cst_3 [1] : vector<8x512xf32> to vector<8xf32>
    %4 = vector.shape_cast %3 : vector<8xf32> to vector<8x1xf32>
    %cst_4 = arith.constant 0.001953125 : f32
    %5 = vector.broadcast %cst_4 : f32 to vector<8x1xf32>
    %6 = arith.mulf %4, %5 : vector<8x1xf32>
    %7 = vector.broadcast %6 : vector<8x1xf32> to vector<8x512xf32>
    %8 = arith.subf %2, %7 : vector<8x512xf32>
    %9 = arith.mulf %8, %8 : vector<8x512xf32>
    %cst_5 = arith.constant dense<0.000000e+00> : vector<8xf32>
    %10 = vector.multi_reduction <add>, %9, %cst_5 [1] : vector<8x512xf32> to vector<8xf32>
    %11 = vector.shape_cast %10 : vector<8xf32> to vector<8x1xf32>
    %cst_6 = arith.constant 0.001953125 : f32
    %12 = vector.broadcast %cst_6 : f32 to vector<8x1xf32>
    %13 = arith.mulf %11, %12 : vector<8x1xf32>
    %c0_7 = arith.constant 0 : index
    %c0_8 = arith.constant 0 : index
    %14 = vector.load %arg3[%c0_7, %c0_8] : memref<8x1xf32, #tpu.memory_space<vmem>>, vector<8x1xf32>
    %cst_9 = arith.constant 9.99999974E-6 : f32
    %15 = vector.broadcast %cst_9 : f32 to vector<8x1xf32>
    %16 = arith.addf %13, %15 : vector<8x1xf32>
    %17 = math.rsqrt %16 : vector<8x1xf32>
    %18 = arith.mulf %14, %17 : vector<8x1xf32>
    %19 = vector.broadcast %18 : vector<8x1xf32> to vector<8x512xf32>
    %20 = arith.mulf %8, %19 : vector<8x512xf32>
    %c0_10 = arith.constant 0 : index
    %c0_11 = arith.constant 0 : index
    %21 = vector.load %arg4[%c0_10, %c0_11] : memref<8x1xf32, #tpu.memory_space<vmem>>, vector<8x1xf32>
    %22 = vector.broadcast %21 : vector<8x1xf32> to vector<8x512xf32>
    %23 = arith.addf %20, %22 : vector<8x512xf32>
    %cst_12 = arith.constant 0.000000e+00 : f32
    %24 = vector.broadcast %cst_12 : f32 to vector<8x512xf32>
    %25 = arith.cmpf oge, %23, %24 : vector<8x512xf32>
    %cst_13 = arith.constant 2.000000e-01 : f32
    %26 = vector.broadcast %cst_13 : f32 to vector<8x512xf32>
    %27 = arith.mulf %26, %23 : vector<8x512xf32>
    %28 = arith.select %25, %23, %27 : vector<8x512xi1>, vector<8x512xf32>
    %29 = vector.extract_strided_slice %28 {offsets = [0, 0], sizes = [8, 256], strides = [1, 1]} : vector<8x512xf32> to vector<8x256xf32>
    %c0_14 = arith.constant 0 : index
    %c0_15 = arith.constant 0 : index
    %c0_16 = arith.constant 0 : index
    %30 = vector.load %arg5[%c0_14, %c0_15, %c0_16] : memref<2x8x256xf32, #tpu.memory_space<vmem>>, vector<1x8x256xf32>
    %31 = vector.shape_cast %30 : vector<1x8x256xf32> to vector<8x256xf32>
    %32 = vector.shape_cast %29 : vector<8x256xf32> to vector<1x8x256xf32>
    tpu.vector_store %arg5[%c0_14, %c0_15, %c0_16], %32 {strides = array<i32>} : memref<2x8x256xf32, #tpu.memory_space<vmem>>, vector<1x8x256xf32>,
    %33 = vector.extract_strided_slice %28 {offsets = [0, 256], sizes = [8, 256], strides = [1, 1]} : vector<8x512xf32> to vector<8x256xf32>
    %c1 = arith.constant 1 : index
    %c0_17 = arith.constant 0 : index
    %c0_18 = arith.constant 0 : index
    %34 = vector.load %arg5[%c1, %c0_17, %c0_18] : memref<2x8x256xf32, #tpu.memory_space<vmem>>, vector<1x8x256xf32>
    %35 = vector.shape_cast %34 : vector<1x8x256xf32> to vector<8x256xf32>
    %36 = vector.shape_cast %33 : vector<8x256xf32> to vector<1x8x256xf32>
    tpu.vector_store %arg5[%c1, %c0_17, %c0_18], %36 {strides = array<i32>} : memref<2x8x256xf32, #tpu.memory_space<vmem>>, vector<1x8x256xf32>,
    return
  }
  func.func @transform_0(%arg0: i32) -> (i32, i32) {
    %c0_i32 = arith.constant 0 : i32
    %c0_i32_0 = arith.constant 0 : i32
    %c0_i32_1 = arith.constant 0 : i32
    return %c0_i32, %c0_i32_0 : i32, i32
  }
  func.func @transform_1(%arg0: i32) -> (i32, i32) {
    %c0_i32 = arith.constant 0 : i32
    %c0_i32_0 = arith.constant 0 : i32
    %c0_i32_1 = arith.constant 0 : i32
    return %c0_i32, %c0_i32_0 : i32, i32
  }
  func.func @transform_2(%arg0: i32) -> (i32, i32) {
    %c0_i32 = arith.constant 0 : i32
    %c0_i32_0 = arith.constant 0 : i32
    %c0_i32_1 = arith.constant 0 : i32
    return %c0_i32, %c0_i32_0 : i32, i32
  }
  func.func @transform_3(%arg0: i32) -> (i32, i32) {
    %c0_i32 = arith.constant 0 : i32
    %c0_i32_0 = arith.constant 0 : i32
    %c0_i32_1 = arith.constant 0 : i32
    return %c0_i32, %c0_i32_0 : i32, i32
  }
  func.func @transform_4(%arg0: i32) -> (i32, i32, i32) {
    %c0_i32 = arith.constant 0 : i32
    %c0_i32_0 = arith.constant 0 : i32
    %c0_i32_1 = arith.constant 0 : i32
    %c0_i32_2 = arith.constant 0 : i32
    return %c0_i32, %c0_i32_0, %c0_i32_1 : i32, i32, i32
  }
}

</mosaic_0001>

<llo_original>
// kernel: tpu_custom_call.1
$region0: #{tpu_custom_call.1}
  #allocation0 [shape = 'u32[]', space=smem, size = 0x4, offset = 0x4, fixed_abs, tag = 'smem constant byte address 0x4 - core index']
  #allocation1 [shape = 'u32[144,128]{1,0:T(1,128)}', space=vmem, size = 0x12000, scoped, tag = 'internal scratch']
  %s0 = inlined_call_operand.hbm [shape: bf16[100,512], index: 0, kind: input, shape index: {}]
  %s1 = inlined_call_operand.vmem [shape: bf16[8,100], index: 1, kind: input, shape index: {}]
  %s2 = inlined_call_operand.vmem [shape: f32[8,1], index: 2, kind: input, shape index: {}]
  %s3 = inlined_call_operand.vmem [shape: f32[8,1], index: 3, kind: input, shape index: {}]
  %s4 = inlined_call_operand.hbm [shape: f32[2,8,256], index: 4, kind: output, shape index: {}]
  %s5 = sld [smem:[#allocation0]]
  $region30: #{tpu_custom_call.1} parent=0
    _
  %s7 = ssub.s32 1, %s5
  %s8 = scalar_select 0, %s7, %s5
  $region1: #{tpu_custom_call.1} parent=0
    #allocation2 [shape = 'u8[106496]{0}', space=vmem, size = 0x1a000, scoped, tag = 'input window, operand 0, single buffered']
    #allocation3 [shape = 's32[1]{0}', space=sflag, size = 0x4, scoped, tag = 'scoped memory for tpu_custom_call.1']
    #allocation4 [shape = 's32[1]{0}', space=sflag, size = 0x4, scoped, tag = 'scoped memory for tpu_custom_call.1']
    #allocation5 [shape = 'u8[16384]{0}', space=vmem, size = 0x4000, scoped, tag = 'output window, operand 0, single buffered']
    %9 = vsyncpa [#allocation3], 0
    %10 = vsyncpa [#allocation4], 0
    // Predicated region
    $region2: #{tpu_custom_call.1} parent=1 // pred_check
      _
    $region3: #{tpu_custom_call.1} parent=1 // pred_check_branch
      %12 = sbr.rel (0) target = $region5
    $region4: #{tpu_custom_call.1} parent=1 // pred_region
      %s14 = ssub.s32 3328, 3328
      %15 = vsyncadd [#allocation3], %s14
      %s16 = sshll.u32 [#allocation2], 4
      %s17 = int_to_ptr.vmem [resolvable:$true] %s16
      %22 = dma.hbm_to_vmem [thread:$0]  %s0, 3328, %s17, [#allocation3], 256, 256, 16
    $region5: #{tpu_custom_call.1} parent=1 // pred_fallthru
      _
    // Predicated region
    $region6: #{tpu_custom_call.1} parent=1 // pred_check
      _
    $region7: #{tpu_custom_call.1} parent=1 // pred_check_branch
      %24 = sbr.rel (0) target = $region9
    $region8: #{tpu_custom_call.1} parent=1 // pred_region
      _
    $region9: #{tpu_custom_call.1} parent=1 // pred_fallthru
      _
    // Predicated region
    $region10: #{tpu_custom_call.1} parent=1 // pred_check
      _
    $region11: #{tpu_custom_call.1} parent=1 // pred_check_branch
      %26 = sbr.rel (0) target = $region13
    $region12: #{tpu_custom_call.1} parent=1 // pred_region
      _
    $region13: #{tpu_custom_call.1} parent=1 // pred_fallthru
      _
    // Predicated region
    $region14: #{tpu_custom_call.1} parent=1 // pred_check
      _
    $region15: #{tpu_custom_call.1} parent=1 // pred_check_branch
      %28 = sbr.rel (0) target = $region17
    $region16: #{tpu_custom_call.1} parent=1 // pred_region
      _
    $region17: #{tpu_custom_call.1} parent=1 // pred_fallthru
      _
    // Predicated region
    $region18: #{tpu_custom_call.1} parent=1 // pred_check
      _
    $region19: #{tpu_custom_call.1} parent=1 // pred_check_branch
      %30 = sbr.rel (0) target = $region21
    $region20: #{tpu_custom_call.1} parent=1 // pred_region
      %31 = dma.done [#allocation3], 3328
    $region21: #{tpu_custom_call.1} parent=1 // pred_fallthru
      _
    %v33 = vld [vmem:[%s1] sm:$0xf]
    %v34 = vld [vmem:[#allocation2] sm:$0xff]
    %v35 = vld [vmem:[#allocation2 + $0x8] sm:$0xff]
    %v36 = vld [vmem:[#allocation2 + $0x10] sm:$0xff]
    %v37 = vld [vmem:[#allocation2 + $0x18] sm:$0xff]
    %v38 = vld [vmem:[#allocation2 + $0x20] sm:$0xff]
    %v39 = vld [vmem:[#allocation2 + $0x28] sm:$0xff]
    %v40 = vld [vmem:[#allocation2 + $0x30] sm:$0xff]
    %v41 = vld [vmem:[#allocation2 + $0x38] sm:$0xff]
    %v42 = vld [vmem:[#allocation2 + $0x40] sm:$0xff]
    %v43 = vld [vmem:[#allocation2 + $0x48] sm:$0xff]
    %v44 = vld [vmem:[#allocation2 + $0x50] sm:$0xff]
    %v45 = vld [vmem:[#allocation2 + $0x58] sm:$0xff]
    %v46 = vld [vmem:[#allocation2 + $0x60] sm:$0xff]
    %v47 = vld [vmem:[#allocation2 + $0x68] sm:$0xff]
    %v48 = vld [vmem:[#allocation2 + $0x70] sm:$0xff]
    %v49 = vld [vmem:[#allocation2 + $0x78] sm:$0xff]
    %v50 = vld [vmem:[#allocation2 + $0x80] sm:$0xff]
    %v51 = vld [vmem:[#allocation2 + $0x88] sm:$0xff]
    %v52 = vld [vmem:[#allocation2 + $0x90] sm:$0xff]
    %v53 = vld [vmem:[#allocation2 + $0x98] sm:$0xff]
    %v54 = vld [vmem:[#allocation2 + $0xa0] sm:$0xff]
    %v55 = vld [vmem:[#allocation2 + $0xa8] sm:$0xff]
    %v56 = vld [vmem:[#allocation2 + $0xb0] sm:$0xff]
    %v57 = vld [vmem:[#allocation2 + $0xb8] sm:$0xff]
    %v58 = vld [vmem:[#allocation2 + $0xc0] sm:$0x33]
    %v59 = vld [vmem:[#allocation2 + $0xc8] sm:$0x33]
    %v86 = vunpack.c.l.b16 %v34
    %v87 = vunpack.c.h.b16 %v34
    %v88 = vunpack.c.l.b16 %v35
    %v89 = vunpack.c.h.b16 %v35
    %v90 = vunpack.c.l.b16 %v36
    %v91 = vunpack.c.h.b16 %v36
    %v92 = vunpack.c.l.b16 %v37
    %v93 = vunpack.c.h.b16 %v37
    %v94 = vunpack.c.l.b16 %v38
    %v95 = vunpack.c.h.b16 %v38
    %v96 = vunpack.c.l.b16 %v39
    %v97 = vunpack.c.h.b16 %v39
    %v98 = vunpack.c.l.b16 %v40
    %v99 = vunpack.c.h.b16 %v40
    %v100 = vunpack.c.l.b16 %v41
    %v101 = vunpack.c.h.b16 %v41
    %v102 = vunpack.c.l.b16 %v42
    %v103 = vunpack.c.h.b16 %v42
    %v104 = vunpack.c.l.b16 %v43
    %v105 = vunpack.c.h.b16 %v43
    %v106 = vunpack.c.l.b16 %v44
    %v107 = vunpack.c.h.b16 %v44
    %v108 = vunpack.c.l.b16 %v45
    %v109 = vunpack.c.h.b16 %v45
    %v110 = vunpack.c.l.b16 %v46
    %v111 = vunpack.c.h.b16 %v46
    %v112 = vunpack.c.l.b16 %v47
    %v113 = vunpack.c.h.b16 %v47
    %v114 = vunpack.c.l.b16 %v48
    %v115 = vunpack.c.h.b16 %v48
    %v116 = vunpack.c.l.b16 %v49
    %v117 = vunpack.c.h.b16 %v49
    %v118 = vunpack.c.l.b16 %v50
    %v119 = vunpack.c.h.b16 %v50
    %v120 = vunpack.c.l.b16 %v51
    %v121 = vunpack.c.h.b16 %v51
    %v122 = vunpack.c.l.b16 %v52
    %v123 = vunpack.c.h.b16 %v52
    %v124 = vunpack.c.l.b16 %v53
    %v125 = vunpack.c.h.b16 %v53
    %v126 = vunpack.c.l.b16 %v54
    %v127 = vunpack.c.h.b16 %v54
    %v128 = vunpack.c.l.b16 %v55
    %v129 = vunpack.c.h.b16 %v55
    %v130 = vunpack.c.l.b16 %v56
    %v131 = vunpack.c.h.b16 %v56
    %v132 = vunpack.c.l.b16 %v57
    %v133 = vunpack.c.h.b16 %v57
    %v134 = vunpack.c.l.b16 %v58
    %v135 = vunpack.c.h.b16 %v58
    %v136 = vunpack.c.l.b16 %v59
    %v137 = vunpack.c.h.b16 %v59
    %v138 = vpack.c.b16 %v90, %v86
    %v139 = vpack.c.b16 %v91, %v87
    %v140 = vpack.c.b16 %v92, %v88
    %v141 = vpack.c.b16 %v93, %v89
    %v142 = vpack.c.b16 %v98, %v94
    %v143 = vpack.c.b16 %v99, %v95
    %v144 = vpack.c.b16 %v100, %v96
    %v145 = vpack.c.b16 %v101, %v97
    %v146 = vpack.c.b16 %v106, %v102
    %v147 = vpack.c.b16 %v107, %v103
    %v148 = vpack.c.b16 %v108, %v104
    %v149 = vpack.c.b16 %v109, %v105
    %v150 = vpack.c.b16 %v114, %v110
    %v151 = vpack.c.b16 %v115, %v111
    %v152 = vpack.c.b16 %v116, %v112
    %v153 = vpack.c.b16 %v117, %v113
    %v154 = vpack.c.b16 %v122, %v118
    %v155 = vpack.c.b16 %v123, %v119
    %v156 = vpack.c.b16 %v124, %v120
    %v157 = vpack.c.b16 %v125, %v121
    %v158 = vpack.c.b16 %v130, %v126
    %v159 = vpack.c.b16 %v131, %v127
    %v160 = vpack.c.b16 %v132, %v128
    %v161 = vpack.c.b16 %v133, %v129
    %v162 = vpack.c.b16 %v134, %v134
    %v163 = vpack.c.b16 %v135, %v135
    %v164 = vpack.c.b16 %v136, %v136
    %v165 = vpack.c.b16 %v137, %v137
    %vm190 = vcmask 818176
    %v192 = vsel %vm190, %v33, 0
    %vm194 = vcmask 1041408
    %v196 = vsel %vm194, %v162, 0
    %v199 = vsel %vm194, %v163, 0
    %v202 = vsel %vm194, %v164, 0
    %v205 = vsel %vm194, %v165, 0
    %207 = vmatprep.subr.bf16.mxu0 %v139
    %208 = vmatpush1.bf16.msra.mxu0 %v138
    %209 = vmatprep.subr.bf16.mxu0 %v143
    %210 = vmatpush1.bf16.msra.mxu0 %v142
    %211 = vmatprep.subr.bf16.mxu0 %v147
    %212 = vmatpush1.bf16.msra.mxu0 %v146
    %213 = vmatprep.subr.bf16.mxu0 %v151
    %214 = vmatpush1.bf16.msra.mxu0 %v150
    %215 = vmatprep.subr.bf16.mxu0 %v155
    %216 = vmatpush1.bf16.msra.mxu0 %v154
    %217 = vmatprep.subr.bf16.mxu0 %v159
    %218 = vmatpush1.bf16.msra.mxu0 %v158
    %219 = vmatprep.subr.bf16.mxu0 %v199
    %220 = vmatpush1.bf16.msra.mxu0 %v196
    %221 = vmatprep.subr.bf16.mxu0 0
    %222 = vmatpush1.bf16.msra.mxu0 0
    %223 = vmatprep.subr.bf16.mxu0 0
    %224 = vmatpush1.bf16.msra.mxu0 0
    %225 = vmatprep.subr.bf16.mxu0 0
    %226 = vmatpush1.bf16.msra.mxu0 0
    %227 = vmatprep.subr.bf16.mxu0 0
    %228 = vmatpush1.bf16.msra.mxu0 0
    %229 = vmatprep.subr.bf16.mxu0 0
    %230 = vmatpush1.bf16.msra.mxu0 0
    %231 = vmatprep.subr.bf16.mxu0 0
    %232 = vmatpush1.bf16.msra.mxu0 0
    %233 = vmatprep.subr.bf16.mxu0 0
    %234 = vmatpush1.bf16.msra.mxu0 0
    %235 = vmatprep.subr.bf16.mxu0 0
    %236 = vmatpush1.bf16.msra.mxu0 0
    %237 = vmatprep.subr.bf16.mxu0 0
    %238 = vmatpush1.bf16.msra.mxu0 0
    %239 = vmatprep.mubr.bf16.mxu0 0
    %240 = vmatmul.mubr.bf16.gmra.mrb[0].mxu0 %v192
    %v241 = vpop.f32.mrb[0].mxu0
    %v242 = vadd.f32 0.0, %v241
    %v243 = vpop.f32.mrb[0].mxu0
    %v244 = vadd.f32 0.0, %v243
    %v245 = vpop.f32.mrb[0].mxu0
    %v246 = vpop.f32.mrb[0].mxu0
    %247 = vdwg.mxu0
    %248 = vmatprep.subr.bf16.mxu0 %v141
    %249 = vmatpush1.bf16.msra.mxu0 %v140
    %250 = vmatprep.subr.bf16.mxu0 %v145
    %251 = vmatpush1.bf16.msra.mxu0 %v144
    %252 = vmatprep.subr.bf16.mxu0 %v149
    %253 = vmatpush1.bf16.msra.mxu0 %v148
    %254 = vmatprep.subr.bf16.mxu0 %v153
    %255 = vmatpush1.bf16.msra.mxu0 %v152
    %256 = vmatprep.subr.bf16.mxu0 %v157
    %257 = vmatpush1.bf16.msra.mxu0 %v156
    %258 = vmatprep.subr.bf16.mxu0 %v161
    %259 = vmatpush1.bf16.msra.mxu0 %v160
    %260 = vmatprep.subr.bf16.mxu0 %v205
    %261 = vmatpush1.bf16.msra.mxu0 %v202
    %262 = vmatprep.subr.bf16.mxu0 0
    %263 = vmatpush1.bf16.msra.mxu0 0
    %264 = vmatprep.subr.bf16.mxu0 0
    %265 = vmatpush1.bf16.msra.mxu0 0
    %266 = vmatprep.subr.bf16.mxu0 0
    %267 = vmatpush1.bf16.msra.mxu0 0
    %268 = vmatprep.subr.bf16.mxu0 0
    %269 = vmatpush1.bf16.msra.mxu0 0
    %270 = vmatprep.subr.bf16.mxu0 0
    %271 = vmatpush1.bf16.msra.mxu0 0
    %272 = vmatprep.subr.bf16.mxu0 0
    %273 = vmatpush1.bf16.msra.mxu0 0
    %274 = vmatprep.subr.bf16.mxu0 0
    %275 = vmatpush1.bf16.msra.mxu0 0
    %276 = vmatprep.subr.bf16.mxu0 0
    %277 = vmatpush1.bf16.msra.mxu0 0
    %278 = vmatprep.subr.bf16.mxu0 0
    %279 = vmatpush1.bf16.msra.mxu0 0
    %280 = vmatprep.mubr.bf16.mxu0 0
    %281 = vmatmul.mubr.bf16.gmra.mrb[0].mxu0 %v192
    %v282 = vpop.f32.mrb[0].mxu0
    %v283 = vadd.f32 0.0, %v282
    %v284 = vpop.f32.mrb[0].mxu0
    %v285 = vadd.f32 0.0, %v284
    %v286 = vpop.f32.mrb[0].mxu0
    %v287 = vpop.f32.mrb[0].mxu0
    %288 = vdwg.mxu0
    %v289 = vadd.f32 %v242, %v244
    %v290 = vadd.f32 %v289, %v283
    %v291 = vadd.f32 %v290, %v285
    %292 = vadd.xlane.f32.xlu0 %v291
    %v293 = vpop.xlane.xlu0 %292
    %v294 = vmul.f32 %v293, 0.001953125
    %v295 = vsub.f32 %v242, %v294
    %v296 = vsub.f32 %v244, %v294
    %v297 = vsub.f32 %v283, %v294
    %v298 = vsub.f32 %v285, %v294
    %v299 = vmul.f32 %v295, %v295
    %v300 = vmul.f32 %v296, %v296
    %v301 = vmul.f32 %v297, %v297
    %v302 = vmul.f32 %v298, %v298
    %v303 = vadd.f32 %v299, %v300
    %v304 = vadd.f32 %v303, %v301
    %v305 = vadd.f32 %v304, %v302
    %306 = vadd.xlane.f32.xlu0 %v305
    %v307 = vpop.xlane.xlu0 %306
    %v308 = vmul.f32 %v307, 0.001953125
    %v309 = vld [vmem:[%s2] sm:$0xff]
    %v310 = vadd.f32 %v308, 1e-05
    %v311 = vrsqrt.pop %v310
    %v312 = vmul.f32 %v309, %v311
    %314 = vset.pattern.permute.xlu0 0
    %315 = vperm.xlu0 %314, %v312
    %v316 = vpop.permute.xlu0 %315
    %v318 = vmul.f32 %v295, %v316
    %v319 = vmul.f32 %v296, %v316
    %v320 = vmul.f32 %v297, %v316
    %v321 = vmul.f32 %v298, %v316
    %v322 = vld [vmem:[%s3] sm:$0xff]
    %324 = vset.pattern.permute.xlu0 0
    %325 = vperm.xlu0 %324, %v322
    %v326 = vpop.permute.xlu0 %325
    %v328 = vadd.f32 %v318, %v326
    %v329 = vadd.f32 %v319, %v326
    %v330 = vadd.f32 %v320, %v326
    %v331 = vadd.f32 %v321, %v326
    %vm332 = vcmp.ge.f32.partialorder %v328, 0.0
    %vm333 = vcmp.ge.f32.partialorder %v329, 0.0
    %vm334 = vcmp.ge.f32.partialorder %v330, 0.0
    %vm335 = vcmp.ge.f32.partialorder %v331, 0.0
    %v336 = vmul.f32 %v328, 0.2
    %v337 = vmul.f32 %v329, 0.2
    %v338 = vmul.f32 %v330, 0.2
    %v339 = vmul.f32 %v331, 0.2
    %v340 = vsel %vm332, %v328, %v336
    %v341 = vsel %vm333, %v329, %v337
    %v342 = vsel %vm334, %v330, %v338
    %v343 = vsel %vm335, %v331, %v339
    %344 = vst [vmem:[#allocation5] sm:$0xff] %v340
    %345 = vst [vmem:[#allocation5 + $0x8] sm:$0xff] %v341
    %s346 = scalar_lea.vmem [#allocation5], 16
    %347 = vst [vmem:[%s346] sm:$0xff] %v342
    %348 = vst [vmem:[%s346 + $0x8] sm:$0xff] %v343
    // Predicated region
    $region22: #{tpu_custom_call.1} parent=1 // pred_check
      _
    $region23: #{tpu_custom_call.1} parent=1 // pred_check_branch
      %350 = sbr.rel (0) target = $region25
    $region24: #{tpu_custom_call.1} parent=1 // pred_region
      %s352 = ssub.s32 512, 512
      %353 = vsyncadd [#allocation4], %s352
      %s354 = sshll.u32 [#allocation5], 4
      %s355 = int_to_ptr.vmem [resolvable:$true] %s354
      %360 = dma.vmem_to_hbm [thread:$0]  %s355, 512, %s4, [#allocation4], 256, 256, 16
    $region25: #{tpu_custom_call.1} parent=1 // pred_fallthru
      _
    // Predicated region
    $region26: #{tpu_custom_call.1} parent=1 // pred_check
      _
    $region27: #{tpu_custom_call.1} parent=1 // pred_check_branch
      %362 = sbr.rel (0) target = $region29
    $region28: #{tpu_custom_call.1} parent=1 // pred_region
      %363 = dma.done [#allocation4], 512
    $region29: #{tpu_custom_call.1} parent=1 // pred_fallthru
      _
    %364 = vsyncpa [#allocation3], 1
    %365 = vsyncpa [#allocation4], 1

</llo_original>
